<compile_context>
chip_gen: v5e
topology: v5e:2x2
jax: 0.10.0
libtpu: 0.0.40
codegen_flags: <defaults>
</compile_context>

<pallas_src>
import jax
import jax.numpy as jnp
from jax.experimental import pallas as pl
from jax.experimental.pallas import tpu as pltpu


_LN_EPS = 1e-5  # torch.nn.LayerNorm default


def _round_up(x, m):
    return ((x + m - 1) // m) * m


# ----------------------------------------------------------------------------
# Kernel: LayerNorm -> adaptive threshold gate -> fused blend -> clamp
# ----------------------------------------------------------------------------
def _threshold_kernel(x_ref, p_ref, at_ref, o_ref):
    # alpha = sigmoid(adaptive_threshold). Scalar lives in SMEM; broadcast to a
    # (1, 1) vector so the transcendental runs on the vector (EUP) path.
    alpha = jax.nn.sigmoid(jnp.full((1, 1), at_ref[0], jnp.float32))   # (1, 1)
    one_minus_alpha = 1.0 - alpha

    # Native-dtype load (bf16/f32), f32 compute.
    x = x_ref[...].astype(jnp.float32)                                 # (tm, D)

    p = p_ref[...]                                                     # (3, D) f32
    g = p[0:1, :]                                                      # ln weight
    b = p[1:2, :]                                                      # ln bias
    rv = p[2:3, :]                                                     # running_var

    # LayerNorm (biased variance, eps inside the rsqrt), one-pass statistics.
    mean = jnp.mean(x, axis=-1, keepdims=True)
    mean_sq = jnp.mean(x * x, axis=-1, keepdims=True)
    var = jnp.maximum(mean_sq - mean * mean, 0.0)
    x_norm = (x - mean) * jax.lax.rsqrt(var + _LN_EPS) * g + b

    # threshold = sigmoid(adaptive_threshold) * sqrt(clamp(running_var, 1e-6))
    thr = alpha * jnp.sqrt(jnp.maximum(rv, 1e-6))                      # (1, D)
    gate = jax.nn.sigmoid(jnp.abs(x_norm) - thr)

    # alpha*(gate*x) + (1-alpha)*x  ==  x * (1 - alpha + alpha*gate)
    out = x * (one_minus_alpha + alpha * gate)

    # Clip before the (possible) downcast.
    o_ref[...] = jnp.clip(out, -100.0, 100.0).astype(o_ref.dtype)


# ----------------------------------------------------------------------------
# Tile heuristic: traffic-driven, VMEM-capped, megacore-friendly.
# ----------------------------------------------------------------------------
def _pick_tile_rows(M, D, itemsize):
    # ~8 MiB of in+out HBM bytes per grid step (amortize per-step overhead).
    target_step_bytes = 8 * 1024 * 1024
    rows_by_traffic = max(16, target_step_bytes // max(1, 2 * D * itemsize))
    # Double-buffered footprint (2x in + 2x out tiles) <= ~24 MiB (v7x-safe).
    vmem_budget = 24 * 1024 * 1024
    rows_by_vmem = max(16, vmem_budget // max(1, 4 * D * itemsize))
    # For large M, keep >= ~8 grid steps (2 TensorCores x >= 4 pipelined steps).
    rows_by_steps = _round_up(pl.cdiv(M, 8), 16)
    tm = min(rows_by_traffic, rows_by_vmem, rows_by_steps)
    tm = max(16, (tm // 16) * 16)          # multiple of 16 (bf16 sublane pack)
    tm = min(tm, _round_up(max(M, 1), 16))  # don't waste VMEM on tiny inputs
    return int(max(tm, 16))


# ----------------------------------------------------------------------------
# Wrapper: flatten leading dims, pack params, launch the pipelined grid.
# ----------------------------------------------------------------------------
def emergent_threshold_forward(x, params, *, tile_rows=None,
                               vmem_limit_bytes=48 * 1024 * 1024):
    orig_shape = x.shape
    D = int(orig_shape[-1])
    M = 1
    for s in orig_shape[:-1]:
        M *= int(s)

    # Keep the native dtype end-to-end (no wrapper-side upcast pass).
    x2d = x.reshape(M, D)
    itemsize = jnp.dtype(x2d.dtype).itemsize

    tm = int(tile_rows) if tile_rows is not None else _pick_tile_rows(M, D, itemsize)
    grid = (pl.cdiv(M, tm),)

    # Pack the three (D,) parameter vectors into one constant (3, D) block.
    params_packed = jnp.stack(
        [
            jnp.asarray(params["ln_w"], jnp.float32).reshape(D),
            jnp.asarray(params["ln_b"], jnp.float32).reshape(D),
            jnp.asarray(params["running_var"], jnp.float32).reshape(D),
        ],
        axis=0,
    )
    at_scalar = jnp.asarray(params["adaptive_threshold"], jnp.float32).reshape(1)

    out = pl.pallas_call(
        _threshold_kernel,
        out_shape=jax.ShapeDtypeStruct((M, D), x2d.dtype),
        grid=grid,
        in_specs=[
            pl.BlockSpec((tm, D), lambda i: (i, 0)),                    # x rows
            pl.BlockSpec((3, D), lambda i: (0, 0)),                     # packed params
            pl.BlockSpec(memory_space=pltpu.MemorySpace.SMEM),          # threshold scalar
        ],
        out_specs=pl.BlockSpec((tm, D), lambda i: (i, 0)),
        compiler_params=pltpu.CompilerParams(
            dimension_semantics=("parallel",),
            vmem_limit_bytes=vmem_limit_bytes,
        ),
    )(x2d, params_packed, at_scalar)
    return out.reshape(orig_shape)


# ----------------------------------------------------------------------------
# Pure-JAX reference (eval-mode PyTorch semantics) for correctness checking.
# ----------------------------------------------------------------------------
def emergent_threshold_reference(x, params):
    x = jnp.asarray(x, jnp.float32)
    mean = jnp.mean(x, axis=-1, keepdims=True)
    var = jnp.mean(jnp.square(x - mean), axis=-1, keepdims=True)
    x_norm = (x - mean) / jnp.sqrt(var + _LN_EPS) * params["ln_w"] + params["ln_b"]
    alpha = jax.nn.sigmoid(params["adaptive_threshold"])[0]
    thr = alpha * jnp.sqrt(jnp.maximum(params["running_var"], 1e-6))
    gate = jax.nn.sigmoid(jnp.abs(x_norm) - thr)
    return jnp.clip(alpha * (gate * x) + (1.0 - alpha) * x, -100.0, 100.0)


if __name__ == "__main__":
    # Small shapes consistent with the module: (batch, seq, feature_dim),
    # lane-dense feature dim.
    B, T, D = 2, 8, 128

    key = jax.random.PRNGKey(0)
    kx, kg, kb, kv = jax.random.split(key, 4)
    x = jax.random.normal(kx, (B, T, D), jnp.float32)
    params = dict(
        ln_w=1.0 + 0.1 * jax.random.normal(kg, (D,), jnp.float32),
        ln_b=0.1 * jax.random.normal(kb, (D,), jnp.float32),
        running_var=jnp.abs(1.0 + 0.1 * jax.random.normal(kv, (D,), jnp.float32)),
        adaptive_threshold=jnp.array([0.5], jnp.float32),  # torch.ones(1) * 0.5
    )

    # f32 input: exact-dtype path, tight check against the reference.
    y = emergent_threshold_forward(x, params)
    jax.block_until_ready(y)
    y_ref = emergent_threshold_reference(x, params)
    assert y.shape == x.shape and y.dtype == x.dtype
    assert bool(jnp.all(jnp.isfinite(y)))
    assert bool(jnp.allclose(y, y_ref, atol=1e-4, rtol=1e-4))

    # bf16 input: native bf16 HBM I/O, f32 in-kernel math, loose tolerance.
    x_bf16 = x.astype(jnp.bfloat16)
    y_bf16 = emergent_threshold_forward(x_bf16, params)
    jax.block_until_ready(y_bf16)
    assert y_bf16.shape == x.shape and y_bf16.dtype == jnp.bfloat16
    y_bf16_f32 = y_bf16.astype(jnp.float32)
    y_bf16_ref = emergent_threshold_reference(x_bf16.astype(jnp.float32), params)
    assert bool(jnp.all(jnp.isfinite(y_bf16_f32)))
    assert bool(jnp.allclose(y_bf16_f32, y_bf16_ref, atol=5e-2, rtol=5e-2))

    print("KERNEL_OK")
</pallas_src>

<mosaic_0001>
module attributes {stable_mosaic.version = 11 : i64} {
  func.func @_threshold_kernel(%arg0: i32, %arg1: memref<16x128xf32, #tpu.memory_space<vmem>>, %arg2: memref<3x128xf32, #tpu.memory_space<vmem>>, %arg3: memref<1xf32, #tpu.memory_space<smem>>, %arg4: memref<16x128xf32, #tpu.memory_space<vmem>>) attributes {dimension_semantics = [#tpu.dimension_semantics<parallel>], iteration_bounds = array<i64: 1>, scalar_prefetch = 0 : i64, scratch_operands = 0 : i64, tpu.core_type = #tpu.core_type<tc>, window_params = [{transform_indices = @transform_0, window_bounds = array<i64: 16, 128>}, {pipeline_mode = #tpu.pipeline_mode<synchronous>, transform_indices = @transform_1, window_bounds = array<i64: 3, 128>}, {transform_indices = @transform_2, window_bounds = array<i64: 1>}, {transform_indices = @transform_3, window_bounds = array<i64: 16, 128>}]} {
    %c0 = arith.constant 0 : index
    %0 = memref.load %arg3[%c0] : memref<1xf32, #tpu.memory_space<smem>>
    %1 = vector.broadcast %0 : f32 to vector<1x1xf32>
    %2 = arith.negf %1 : vector<1x1xf32>
    %3 = math.exp %2 : vector<1x1xf32>
    %cst = arith.constant 1.000000e+00 : f32
    %4 = vector.broadcast %cst : f32 to vector<1x1xf32>
    %5 = arith.addf %4, %3 : vector<1x1xf32>
    %6 = arith.divf %4, %5 : vector<1x1xf32>
    %cst_0 = arith.constant 1.000000e+00 : f32
    %7 = vector.broadcast %cst_0 : f32 to vector<1x1xf32>
    %8 = arith.subf %7, %6 : vector<1x1xf32>
    %c0_1 = arith.constant 0 : index
    %c0_2 = arith.constant 0 : index
    %9 = vector.load %arg1[%c0_1, %c0_2] : memref<16x128xf32, #tpu.memory_space<vmem>>, vector<16x128xf32>
    %c0_3 = arith.constant 0 : index
    %c0_4 = arith.constant 0 : index
    %10 = vector.load %arg2[%c0_3, %c0_4] : memref<3x128xf32, #tpu.memory_space<vmem>>, vector<3x128xf32>
    %11 = vector.extract_strided_slice %10 {offsets = [0, 0], sizes = [1, 128], strides = [1, 1]} : vector<3x128xf32> to vector<1x128xf32>
    %12 = vector.extract_strided_slice %10 {offsets = [1, 0], sizes = [1, 128], strides = [1, 1]} : vector<3x128xf32> to vector<1x128xf32>
    %13 = vector.extract_strided_slice %10 {offsets = [2, 0], sizes = [1, 128], strides = [1, 1]} : vector<3x128xf32> to vector<1x128xf32>
    %cst_5 = arith.constant dense<0.000000e+00> : vector<16xf32>
    %14 = vector.multi_reduction <add>, %9, %cst_5 [1] : vector<16x128xf32> to vector<16xf32>
    %15 = vector.shape_cast %14 : vector<16xf32> to vector<16x1xf32>
    %cst_6 = arith.constant 1.280000e+02 : f32
    %16 = vector.broadcast %cst_6 : f32 to vector<16x1xf32>
    %17 = arith.divf %15, %16 : vector<16x1xf32>
    %18 = arith.mulf %9, %9 : vector<16x128xf32>
    %cst_7 = arith.constant dense<0.000000e+00> : vector<16xf32>
    %19 = vector.multi_reduction <add>, %18, %cst_7 [1] : vector<16x128xf32> to vector<16xf32>
    %20 = vector.shape_cast %19 : vector<16xf32> to vector<16x1xf32>
    %cst_8 = arith.constant 1.280000e+02 : f32
    %21 = vector.broadcast %cst_8 : f32 to vector<16x1xf32>
    %22 = arith.divf %20, %21 : vector<16x1xf32>
    %23 = arith.mulf %17, %17 : vector<16x1xf32>
    %24 = arith.subf %22, %23 : vector<16x1xf32>
    %cst_9 = arith.constant 0.000000e+00 : f32
    %25 = vector.broadcast %cst_9 : f32 to vector<16x1xf32>
    %26 = arith.maximumf %24, %25 : vector<16x1xf32>
    %27 = vector.broadcast %17 : vector<16x1xf32> to vector<16x128xf32>
    %28 = arith.subf %9, %27 : vector<16x128xf32>
    %cst_10 = arith.constant 9.99999974E-6 : f32
    %29 = vector.broadcast %cst_10 : f32 to vector<16x1xf32>
    %30 = arith.addf %26, %29 : vector<16x1xf32>
    %31 = math.rsqrt %30 : vector<16x1xf32>
    %32 = vector.broadcast %31 : vector<16x1xf32> to vector<16x128xf32>
    %33 = arith.mulf %28, %32 : vector<16x128xf32>
    %34 = vector.broadcast %11 : vector<1x128xf32> to vector<16x128xf32>
    %35 = arith.mulf %33, %34 : vector<16x128xf32>
    %36 = vector.broadcast %12 : vector<1x128xf32> to vector<16x128xf32>
    %37 = arith.addf %35, %36 : vector<16x128xf32>
    %cst_11 = arith.constant 9.99999997E-7 : f32
    %38 = vector.broadcast %cst_11 : f32 to vector<1x128xf32>
    %39 = arith.maximumf %13, %38 : vector<1x128xf32>
    %40 = math.sqrt %39 : vector<1x128xf32>
    %41 = vector.broadcast %6 : vector<1x1xf32> to vector<1x128xf32>
    %42 = arith.mulf %41, %40 : vector<1x128xf32>
    %43 = math.absf %37 : vector<16x128xf32>
    %44 = vector.broadcast %42 : vector<1x128xf32> to vector<16x128xf32>
    %45 = arith.subf %43, %44 : vector<16x128xf32>
    %46 = arith.negf %45 : vector<16x128xf32>
    %47 = math.exp %46 : vector<16x128xf32>
    %cst_12 = arith.constant 1.000000e+00 : f32
    %48 = vector.broadcast %cst_12 : f32 to vector<16x128xf32>
    %49 = arith.addf %48, %47 : vector<16x128xf32>
    %50 = arith.divf %48, %49 : vector<16x128xf32>
    %51 = vector.broadcast %6 : vector<1x1xf32> to vector<16x128xf32>
    %52 = arith.mulf %51, %50 : vector<16x128xf32>
    %53 = vector.broadcast %8 : vector<1x1xf32> to vector<16x128xf32>
    %54 = arith.addf %53, %52 : vector<16x128xf32>
    %55 = arith.mulf %9, %54 : vector<16x128xf32>
    %cst_13 = arith.constant -1.000000e+02 : f32
    %cst_14 = arith.constant 1.000000e+02 : f32
    %56 = vector.broadcast %cst_13 : f32 to vector<16x128xf32>
    %57 = arith.maximumf %56, %55 : vector<16x128xf32>
    %58 = vector.broadcast %cst_14 : f32 to vector<16x128xf32>
    %59 = arith.minimumf %58, %57 : vector<16x128xf32>
    %c0_15 = arith.constant 0 : index
    %c0_16 = arith.constant 0 : index
    %60 = vector.load %arg4[%c0_15, %c0_16] : memref<16x128xf32, #tpu.memory_space<vmem>>, vector<16x128xf32>
    tpu.vector_store %arg4[%c0_15, %c0_16], %59 {strides = array<i32>} : memref<16x128xf32, #tpu.memory_space<vmem>>, vector<16x128xf32>,
    return
  }
  func.func @transform_0(%arg0: i32) -> (i32, i32) {
    %c0_i32 = arith.constant 0 : i32
    %c0_i32_0 = arith.constant 0 : i32
    return %arg0, %c0_i32 : i32, i32
  }
  func.func @transform_1(%arg0: i32) -> (i32, i32) {
    %c0_i32 = arith.constant 0 : i32
    %c0_i32_0 = arith.constant 0 : i32
    %c0_i32_1 = arith.constant 0 : i32
    return %c0_i32, %c0_i32_0 : i32, i32
  }
  func.func @transform_2(%arg0: i32) -> i32 {
    %c0_i32 = arith.constant 0 : i32
    %c0_i32_0 = arith.constant 0 : i32
    return %c0_i32 : i32
  }
  func.func @transform_3(%arg0: i32) -> (i32, i32) {
    %c0_i32 = arith.constant 0 : i32
    %c0_i32_0 = arith.constant 0 : i32
    return %arg0, %c0_i32 : i32, i32
  }
}

</mosaic_0001>

<llo_original>
// kernel: tpu_custom_call.1
$region0: #{tpu_custom_call.1}
  #allocation0 [shape = 'u32[]', space=smem, size = 0x4, offset = 0x4, fixed_abs, tag = 'smem constant byte address 0x4 - core index']
  #allocation1 [shape = 'u32[72,128]{1,0:T(1,128)}', space=vmem, size = 0x9000, scoped, tag = 'internal scratch']
  #allocation2 [shape = 'f32[1]{0:T(128)S(6)}', space=smem, size = 0x200, scoped, tag = 'scoped memory for tpu_custom_call.1']
  %s0 = inlined_call_operand.hbm [shape: f32[16,128], index: 0, kind: input, shape index: {}]
  %s1 = inlined_call_operand.hbm [shape: f32[3,128], index: 1, kind: input, shape index: {}]
  %s2 = inlined_call_operand.<no memory space> [shape: f32[1], index: 2, kind: input, shape index: {}]
  %s3 = inlined_call_operand.hbm [shape: f32[16,128], index: 3, kind: output, shape index: {}]
  %s4 = sld [smem:[#allocation0]]
  $region30: #{tpu_custom_call.1} parent=0
    _
  %s6 = ssub.s32 1, %s4
  %s7 = scalar_select 0, %s6, %s4
  %8 = sst [smem:[#allocation2]] %s2
  $region1: #{tpu_custom_call.1} parent=0
    #allocation3 [shape = 'u8[8192]{0}', space=vmem, size = 0x2000, scoped, tag = 'input window, operand 0, single buffered']
    #allocation4 [shape = 's32[1]{0}', space=sflag, size = 0x4, scoped, tag = 'scoped memory for tpu_custom_call.1']
    #allocation5 [shape = 's32[1]{0}', space=sflag, size = 0x4, scoped, tag = 'scoped memory for tpu_custom_call.1']
    #allocation6 [shape = 'u8[2048]{0}', space=vmem, size = 0x800, scoped, tag = 'input window, operand 1, single buffered']
    #allocation7 [shape = 's32[1]{0}', space=sflag, size = 0x4, scoped, tag = 'scoped memory for tpu_custom_call.1']
    #allocation8 [shape = 'u8[8192]{0}', space=vmem, size = 0x2000, scoped, tag = 'output window, operand 0, single buffered']
    %9 = vsyncpa [#allocation4], 0
    %10 = vsyncpa [#allocation7], 0
    %11 = vsyncpa [#allocation5], 0
    // Predicated region
    $region2: #{tpu_custom_call.1} parent=1 // pred_check
      _
    $region3: #{tpu_custom_call.1} parent=1 // pred_check_branch
      %13 = sbr.rel (0) target = $region5
    $region4: #{tpu_custom_call.1} parent=1 // pred_region
      %15 = vsyncadd [#allocation4], 0
      %s16 = sshll.u32 %s0, 4
      %s17 = int_to_ptr.hbm [resolvable:$true] %s16
      %s18 = sshll.u32 [#allocation3], 4
      %s19 = int_to_ptr.vmem [resolvable:$true] %s18
      %24 = dma.hbm_to_vmem [thread:$0]  %s17, 256, %s19, [#allocation4], 128, 128, 8
    $region5: #{tpu_custom_call.1} parent=1 // pred_fallthru
      _
    // Predicated region
    $region6: #{tpu_custom_call.1} parent=1 // pred_check
      _
    $region7: #{tpu_custom_call.1} parent=1 // pred_check_branch
      %26 = sbr.rel (0) target = $region9
    $region8: #{tpu_custom_call.1} parent=1 // pred_region
      %28 = vsyncadd [#allocation7], 0
      %s30 = sshll.u32 %s1, 4
      %s31 = int_to_ptr.hbm [resolvable:$true] %s30
      %s32 = sshll.u32 [#allocation6], 4
      %s33 = int_to_ptr.vmem [resolvable:$true] %s32
      %35 = dma.hbm_to_vmem [thread:$0]  %s31, 64, %s33, [#allocation7]
    $region9: #{tpu_custom_call.1} parent=1 // pred_fallthru
      _
    // Predicated region
    $region10: #{tpu_custom_call.1} parent=1 // pred_check
      _
    $region11: #{tpu_custom_call.1} parent=1 // pred_check_branch
      %37 = sbr.rel (0) target = $region13
    $region12: #{tpu_custom_call.1} parent=1 // pred_region
      _
    $region13: #{tpu_custom_call.1} parent=1 // pred_fallthru
      _
    // Predicated region
    $region14: #{tpu_custom_call.1} parent=1 // pred_check
      _
    $region15: #{tpu_custom_call.1} parent=1 // pred_check_branch
      %39 = sbr.rel (0) target = $region17
    $region16: #{tpu_custom_call.1} parent=1 // pred_region
      %41 = dma.done [#allocation4], 256
    $region17: #{tpu_custom_call.1} parent=1 // pred_fallthru
      _
    // Predicated region
    $region18: #{tpu_custom_call.1} parent=1 // pred_check
      _
    $region19: #{tpu_custom_call.1} parent=1 // pred_check_branch
      %43 = sbr.rel (0) target = $region21
    $region20: #{tpu_custom_call.1} parent=1 // pred_region
      %45 = dma.done [#allocation7], 64
    $region21: #{tpu_custom_call.1} parent=1 // pred_fallthru
      _
    %s46 = sld [smem:[#allocation2]]
    %v47 = vstv %s46
    %v48 = vxor.u32 %v47, 2147483648
    %v49 = vmul.f32 %v48, 1.442695
    %v50 = vpow.pop %v49
    %v51 = vadd.f32 %v50, 1.0
    %v52 = vrcp.pop %v51
    %v53 = vmul.f32 %v51, %v52
    %v54 = vsub.f32 1.0, %v53
    %v55 = vmul.f32 %v52, %v54
    %v56 = vadd.f32 %v52, %v55
    %vm57 = vweird.f32 %v51
    %vm58 = vweird.f32 %v52
    %vm59 = vmor %vm57, %vm58
    %v60 = vsel %vm59, %v52, %v56
    %v61 = vand.u32 2147483647, %v51
    %vm62 = vcmp.eq.f32.partialorder %v61, 8.507059e+37
    %v63 = vand.u32 %v51, 2147483648
    %v64 = vor.u32 1.1754944e-38, %v63
    %v65 = vsel %vm62, %v64, %v60
    %v66 = vmul.f32 1.0, %v65
    %v67 = vsub.f32 1.0, %v66
    %v68 = vld [vmem:[#allocation3] sm:$0xff]
    %v69 = vld [vmem:[#allocation3 + $0x8] sm:$0xff]
    %v70 = vld [vmem:[#allocation6] sm:$0x7]
    %71 = vadd.xlane.f32.xlu0 %v68
    %v72 = vpop.xlane.xlu0 %71
    %73 = vadd.xlane.f32.xlu0 %v69
    %v74 = vpop.xlane.xlu0 %73
    %v75 = vrcp.pop 128.0
    %v76 = vmul.f32 128.0, %v75
    %v77 = vsub.f32 1.0, %v76
    %v78 = vmul.f32 %v75, %v77
    %v79 = vadd.f32 %v75, %v78
    %vm80 = vweird.f32 %v75
    %v81 = vsel %vm80, %v75, %v79
    %v82 = vmul.f32 %v72, %v81
    %v83 = vmul.f32 %v74, %v81
    %v84 = vmul.f32 %v68, %v68
    %v85 = vmul.f32 %v69, %v69
    %86 = vadd.xlane.f32.xlu0 %v84
    %v87 = vpop.xlane.xlu0 %86
    %88 = vadd.xlane.f32.xlu0 %v85
    %v89 = vpop.xlane.xlu0 %88
    %v90 = vmul.f32 %v87, %v81
    %v91 = vmul.f32 %v89, %v81
    %v92 = vmul.f32 %v82, %v82
    %v93 = vmul.f32 %v83, %v83
    %v94 = vsub.f32 %v90, %v92
    %v95 = vsub.f32 %v91, %v93
    %v96 = vmax.f32 %v94, 0.0
    %v97 = vmax.f32 %v95, 0.0
    %v98 = vsub.f32 %v68, %v82
    %v99 = vsub.f32 %v69, %v83
    %v100 = vadd.f32 %v96, 1e-05
    %v101 = vadd.f32 %v97, 1e-05
    %v102 = vrsqrt.pop %v100
    %v103 = vmul.f32 %v102, %v100
    %v104 = vmul.f32 %v103, %v102
    %v105 = vmul.f32 0.5, %v104
    %v106 = vsub.f32 1.5, %v105
    %v107 = vmul.f32 %v102, %v106
    %vm108 = vweird.f32 %v100
    %vm109 = vweird.f32 %v102
    %vm110 = vmor %vm108, %vm109
    %v111 = vsel %vm110, %v102, %v107
    %v112 = vrsqrt.pop %v101
    %v113 = vmul.f32 %v112, %v101
    %v114 = vmul.f32 %v113, %v112
    %v115 = vmul.f32 0.5, %v114
    %v116 = vsub.f32 1.5, %v115
    %v117 = vmul.f32 %v112, %v116
    %vm118 = vweird.f32 %v101
    %vm119 = vweird.f32 %v112
    %vm120 = vmor %vm118, %vm119
    %v121 = vsel %vm120, %v112, %v117
    %v122 = vmul.f32 %v98, %v111
    %v123 = vmul.f32 %v99, %v121
    %v124 = vperm.slane %v70, 0
    %v125 = vmul.f32 %v122, %v124
    %v126 = vmul.f32 %v123, %v124
    %v127 = vperm.slane %v70, 1
    %v128 = vadd.f32 %v125, %v127
    %v129 = vadd.f32 %v126, %v127
    %v130 = vmax.f32 %v70, 1e-06
    %v131 = vrsqrt.pop %v130
    %v132 = vmul.f32 %v131, %v130
    %v133 = vmul.f32 %v132, %v131
    %v134 = vmul.f32 0.5, %v133
    %v135 = vsub.f32 1.5, %v134
    %v136 = vmul.f32 %v131, %v135
    %v137 = vmul.f32 %v130, %v136
    %vm138 = vcmp.eq.f32.partialorder %v130, inf
    %v139 = vsel %vm138, %v130, %v137
    %vm140 = vcmp.eq.f32.partialorder %v130, 0.0
    %v141 = vand.u32 %v130, 2147483648
    %v142 = vsel %vm140, %v141, %v139
    %v143 = vmul.f32 %v66, %v142
    %v144 = vand.u32 2147483647, %v128
    %v145 = vand.u32 2147483647, %v129
    %v146 = vperm.slane %v143, 2
    %v147 = vsub.f32 %v144, %v146
    %v148 = vsub.f32 %v145, %v146
    %v149 = vxor.u32 %v147, 2147483648
    %v150 = vxor.u32 %v148, 2147483648
    %v151 = vmul.f32 %v149, 1.442695
    %v152 = vpow.pop %v151
    %v153 = vmul.f32 %v150, 1.442695
    %v154 = vpow.pop %v153
    %v155 = vadd.f32 %v152, 1.0
    %v156 = vadd.f32 %v154, 1.0
    %v157 = vrcp.pop %v155
    %v158 = vmul.f32 %v155, %v157
    %v159 = vsub.f32 1.0, %v158
    %v160 = vmul.f32 %v157, %v159
    %v161 = vadd.f32 %v157, %v160
    %vm162 = vweird.f32 %v155
    %vm163 = vweird.f32 %v157
    %vm164 = vmor %vm162, %vm163
    %v165 = vsel %vm164, %v157, %v161
    %v166 = vand.u32 2147483647, %v155
    %vm167 = vcmp.eq.f32.partialorder %v166, 8.507059e+37
    %v168 = vand.u32 %v155, 2147483648
    %v169 = vor.u32 1.1754944e-38, %v168
    %v170 = vsel %vm167, %v169, %v165
    %v171 = vmul.f32 1.0, %v170
    %v172 = vrcp.pop %v156
    %v173 = vmul.f32 %v156, %v172
    %v174 = vsub.f32 1.0, %v173
    %v175 = vmul.f32 %v172, %v174
    %v176 = vadd.f32 %v172, %v175
    %vm177 = vweird.f32 %v156
    %vm178 = vweird.f32 %v172
    %vm179 = vmor %vm177, %vm178
    %v180 = vsel %vm179, %v172, %v176
    %v181 = vand.u32 2147483647, %v156
    %vm182 = vcmp.eq.f32.partialorder %v181, 8.507059e+37
    %v183 = vand.u32 %v156, 2147483648
    %v184 = vor.u32 1.1754944e-38, %v183
    %v185 = vsel %vm182, %v184, %v180
    %v186 = vmul.f32 1.0, %v185
    %v187 = vmul.f32 %v66, %v171
    %v188 = vmul.f32 %v66, %v186
    %v189 = vadd.f32 %v67, %v187
    %v190 = vadd.f32 %v67, %v188
    %v191 = vmul.f32 %v68, %v189
    %v192 = vmul.f32 %v69, %v190
    %v193 = vmax.f32 %v191, -100.0
    %v194 = vmax.f32 %v192, -100.0
    %v195 = vmin.f32 %v193, 100.0
    %v196 = vmin.f32 %v194, 100.0
    %197 = vst [vmem:[#allocation8] sm:$0xff] %v195
    %198 = vst [vmem:[#allocation8 + $0x8] sm:$0xff] %v196
    // Predicated region
    $region22: #{tpu_custom_call.1} parent=1 // pred_check
      _
    $region23: #{tpu_custom_call.1} parent=1 // pred_check_branch
      %200 = sbr.rel (0) target = $region25
    $region24: #{tpu_custom_call.1} parent=1 // pred_region
      %202 = vsyncadd [#allocation5], 0
      %s203 = sshll.u32 [#allocation8], 4
      %s204 = int_to_ptr.vmem [resolvable:$true] %s203
      %s205 = sshll.u32 %s3, 4
      %s206 = int_to_ptr.hbm [resolvable:$true] %s205
      %211 = dma.vmem_to_hbm [thread:$0]  %s204, 256, %s206, [#allocation5], 128, 128, 8
    $region25: #{tpu_custom_call.1} parent=1 // pred_fallthru
      _
    // Predicated region
    $region26: #{tpu_custom_call.1} parent=1 // pred_check
      _
    $region27: #{tpu_custom_call.1} parent=1 // pred_check_branch
      %213 = sbr.rel (0) target = $region29
    $region28: #{tpu_custom_call.1} parent=1 // pred_region
      %215 = dma.done [#allocation5], 256
    $region29: #{tpu_custom_call.1} parent=1 // pred_fallthru
      _
    %216 = vsyncpa [#allocation4], 1
    %217 = vsyncpa [#allocation7], 1
    %218 = vsyncpa [#allocation5], 1

</llo_original>
